<compile_context>
chip_gen: v7x
topology: tpu7x:2x2x1
jax: 0.10.0
libtpu: 0.0.40
codegen_flags: <defaults>
</compile_context>

<pallas_src>
import functools
import math

import jax
import jax.numpy as jnp
from jax.experimental import pallas as pl
from jax.experimental.pallas import tpu as pltpu

_INV_SQRT2 = 1.0 / math.sqrt(2.0)


def _fusion_kernel(lstm_ref, tr_ref, w1a_ref, w1b_ref, b1_ref, w2_ref, b2_ref,
                   o_ref, *, compute_dtype):
    cd = compute_dtype

    # First linear, concat eliminated by splitting W1:
    #   h = [lstm | tr] @ W1 + b1  ==  lstm @ W1[:L] + tr @ W1[L:] + b1
    a = lstm_ref[...].astype(cd)
    t = tr_ref[...].astype(cd)
    h = jnp.dot(a, w1a_ref[...].astype(cd), preferred_element_type=jnp.float32)
    h = h + jnp.dot(t, w1b_ref[...].astype(cd), preferred_element_type=jnp.float32)
    h = h + b1_ref[...]                                            # (TM, H) f32

    # Exact GELU (erf-based, matches torch.nn.GELU() default). Kept in f32.
    h = 0.5 * h * (1.0 + jax.lax.erf(h * _INV_SQRT2))

    # Dropout(p=0.1) -> identity in eval mode.

    # Second linear.
    o = jnp.dot(h.astype(cd), w2_ref[...].astype(cd),
                preferred_element_type=jnp.float32)
    o = o + b2_ref[...]                                            # (TM, O) f32

    o_ref[...] = o.astype(o_ref.dtype)


def _round_up(x, m):
    return ((x + m - 1) // m) * m


def concatenate_fusion(lstm_features, transformer_features, params, *,
                       block_rows=1024, compute_dtype=jnp.bfloat16):
    """lstm_features: (B, L), transformer_features: (B, T).

    params = (w1, b1, w2, b2) with w1: (L+T, H), b1: (1, H),
             w2: (H, O), b2: (1, O)   [weights already in (in, out) layout].
    """
    w1, b1, w2, b2 = params
    B, L = lstm_features.shape
    T = transformer_features.shape[1]
    H = w1.shape[1]
    O = w2.shape[1]

    # Split W1 outside the kernel (free XLA slice) -> no in-kernel concat.
    w1a = w1[:L, :]
    w1b = w1[L:, :]

    # Row-tile: multiple of 8 (sublane), capped by batch; >=512 recommended at
    # real batch sizes, but never bigger than needed for tiny inputs.
    tm = min(_round_up(block_rows, 8), _round_up(B, 8))
    grid = (pl.cdiv(B, tm),)

    kernel = functools.partial(_fusion_kernel, compute_dtype=compute_dtype)

    grid_spec = pltpu.PrefetchScalarGridSpec(
        num_scalar_prefetch=0,
        grid=grid,
        in_specs=[
            pl.BlockSpec((tm, L), lambda i: (i, 0)),   # lstm rows tile
            pl.BlockSpec((tm, T), lambda i: (i, 0)),   # transformer rows tile
            pl.BlockSpec((L, H), lambda i: (0, 0)),    # W1 top half (resident)
            pl.BlockSpec((T, H), lambda i: (0, 0)),    # W1 bottom half (resident)
            pl.BlockSpec((1, H), lambda i: (0, 0)),    # b1
            pl.BlockSpec((H, O), lambda i: (0, 0)),    # W2
            pl.BlockSpec((1, O), lambda i: (0, 0)),    # b2
        ],
        out_specs=pl.BlockSpec((tm, O), lambda i: (i, 0)),
    )

    return pl.pallas_call(
        kernel,
        out_shape=jax.ShapeDtypeStruct((B, O), jnp.float32),
        grid_spec=grid_spec,
        compiler_params=pltpu.CompilerParams(
            dimension_semantics=("parallel",)),
    )(lstm_features, transformer_features, w1a, w1b, b1, w2, b2)


def init_params(lstm_dim, transformer_dim, key):
    """Deterministic parameter init mimicking nn.Linear default (Kaiming-uniform-ish)."""
    in_dim = lstm_dim + transformer_dim
    hidden = in_dim // 2
    out_dim = in_dim // 4
    k1, k2, k3, k4 = jax.random.split(key, 4)

    bound1 = 1.0 / math.sqrt(in_dim)
    # PyTorch stores weight as (out, in); kernel uses (in, out) so transpose.
    w1_t = jax.random.uniform(k1, (hidden, in_dim), jnp.float32, -bound1, bound1).T
    b1 = jax.random.uniform(k2, (1, hidden), jnp.float32, -bound1, bound1)

    bound2 = 1.0 / math.sqrt(hidden)
    w2_t = jax.random.uniform(k3, (out_dim, hidden), jnp.float32, -bound2, bound2).T
    b2 = jax.random.uniform(k4, (1, out_dim), jnp.float32, -bound2, bound2)

    return (w1_t, b1, w2_t, b2)


def _reference(lstm_features, transformer_features, params, compute_dtype):
    """Pure-JAX reference of the same math (same bf16 matmul operands)."""
    w1, b1, w2, b2 = params
    L = lstm_features.shape[1]
    cd = compute_dtype
    h = jnp.dot(lstm_features.astype(cd), w1[:L, :].astype(cd),
                preferred_element_type=jnp.float32)
    h = h + jnp.dot(transformer_features.astype(cd), w1[L:, :].astype(cd),
                    preferred_element_type=jnp.float32)
    h = h + b1
    h = 0.5 * h * (1.0 + jax.lax.erf(h * _INV_SQRT2))
    o = jnp.dot(h.astype(cd), w2.astype(cd), preferred_element_type=jnp.float32)
    return o + b2


if __name__ == "__main__":
    lstm_dim = 32
    transformer_dim = 32

    key = jax.random.PRNGKey(0)
    k_lstm, k_tr, k_params = jax.random.split(key, 3)
    params = init_params(lstm_dim, transformer_dim, k_params)
    out_dim = (lstm_dim + transformer_dim) // 4

    # --- small single-block case ---------------------------------------------
    batch = 8
    lstm_features = jax.random.normal(k_lstm, (batch, lstm_dim), jnp.float32)
    transformer_features = jax.random.normal(k_tr, (batch, transformer_dim), jnp.float32)

    out = concatenate_fusion(lstm_features, transformer_features, params)
    out = jax.block_until_ready(out)

    ref = _reference(lstm_features, transformer_features, params, jnp.bfloat16)
    assert out.shape == (batch, out_dim)
    assert jnp.allclose(out, ref, atol=1e-3, rtol=1e-3)

    # --- multi-step grid case (exercises pipelining over batch tiles) --------
    batch2 = 48
    k_lstm2, k_tr2 = jax.random.split(jax.random.PRNGKey(1), 2)
    lstm2 = jax.random.normal(k_lstm2, (batch2, lstm_dim), jnp.float32)
    tr2 = jax.random.normal(k_tr2, (batch2, transformer_dim), jnp.float32)

    out2 = concatenate_fusion(lstm2, tr2, params, block_rows=16)
    out2 = jax.block_until_ready(out2)

    ref2 = _reference(lstm2, tr2, params, jnp.bfloat16)
    assert out2.shape == (batch2, out_dim)
    assert jnp.allclose(out2, ref2, atol=1e-3, rtol=1e-3)

    print("KERNEL_OK")
</pallas_src>

<mosaic_0001>
module attributes {stable_mosaic.version = 11 : i64} {
  func.func @_fusion_kernel(%arg0: i32, %arg1: memref<8x32xf32, #tpu.memory_space<vmem>>, %arg2: memref<8x32xf32, #tpu.memory_space<vmem>>, %arg3: memref<32x32xf32, #tpu.memory_space<vmem>>, %arg4: memref<32x32xf32, #tpu.memory_space<vmem>>, %arg5: memref<1x32xf32, #tpu.memory_space<vmem>>, %arg6: memref<32x16xf32, #tpu.memory_space<vmem>>, %arg7: memref<1x16xf32, #tpu.memory_space<vmem>>, %arg8: memref<8x16xf32, #tpu.memory_space<vmem>>) attributes {dimension_semantics = [#tpu.dimension_semantics<parallel>], iteration_bounds = array<i64: 1>, scalar_prefetch = 0 : i64, scratch_operands = 0 : i64, tpu.core_type = #tpu.core_type<tc>, window_params = [{transform_indices = @transform_0, window_bounds = array<i64: 8, 32>}, {transform_indices = @transform_1, window_bounds = array<i64: 8, 32>}, {pipeline_mode = #tpu.pipeline_mode<synchronous>, transform_indices = @transform_2, window_bounds = array<i64: 32, 32>}, {pipeline_mode = #tpu.pipeline_mode<synchronous>, transform_indices = @transform_3, window_bounds = array<i64: 32, 32>}, {pipeline_mode = #tpu.pipeline_mode<synchronous>, transform_indices = @transform_4, window_bounds = array<i64: 1, 32>}, {pipeline_mode = #tpu.pipeline_mode<synchronous>, transform_indices = @transform_5, window_bounds = array<i64: 32, 16>}, {pipeline_mode = #tpu.pipeline_mode<synchronous>, transform_indices = @transform_6, window_bounds = array<i64: 1, 16>}, {transform_indices = @transform_7, window_bounds = array<i64: 8, 16>}]} {
    %c0 = arith.constant 0 : index
    %c0_0 = arith.constant 0 : index
    %0 = vector.load %arg1[%c0, %c0_0] : memref<8x32xf32, #tpu.memory_space<vmem>>, vector<8x32xf32>
    %1 = arith.truncf %0 : vector<8x32xf32> to vector<8x32xbf16>
    %c0_1 = arith.constant 0 : index
    %c0_2 = arith.constant 0 : index
    %2 = vector.load %arg2[%c0_1, %c0_2] : memref<8x32xf32, #tpu.memory_space<vmem>>, vector<8x32xf32>
    %3 = arith.truncf %2 : vector<8x32xf32> to vector<8x32xbf16>
    %c0_3 = arith.constant 0 : index
    %c0_4 = arith.constant 0 : index
    %4 = vector.load %arg3[%c0_3, %c0_4] : memref<32x32xf32, #tpu.memory_space<vmem>>, vector<32x32xf32>
    %5 = arith.truncf %4 : vector<32x32xf32> to vector<32x32xbf16>
    %cst = arith.constant dense<0.000000e+00> : vector<8x32xf32>
    %6 = tpu.matmul %1, %5, %cst {dimension_numbers = #tpu.dot_dimension_numbers<[1], [0], [0], [1], [0, 0, 1, 1], [], []>} : vector<8x32xbf16>, vector<32x32xbf16>, vector<8x32xf32> -> vector<8x32xf32>
    %c0_5 = arith.constant 0 : index
    %c0_6 = arith.constant 0 : index
    %7 = vector.load %arg4[%c0_5, %c0_6] : memref<32x32xf32, #tpu.memory_space<vmem>>, vector<32x32xf32>
    %8 = arith.truncf %7 : vector<32x32xf32> to vector<32x32xbf16>
    %cst_7 = arith.constant dense<0.000000e+00> : vector<8x32xf32>
    %9 = tpu.matmul %3, %8, %cst_7 {dimension_numbers = #tpu.dot_dimension_numbers<[1], [0], [0], [1], [0, 0, 1, 1], [], []>} : vector<8x32xbf16>, vector<32x32xbf16>, vector<8x32xf32> -> vector<8x32xf32>
    %10 = arith.addf %6, %9 : vector<8x32xf32>
    %c0_8 = arith.constant 0 : index
    %c0_9 = arith.constant 0 : index
    %11 = vector.load %arg5[%c0_8, %c0_9] : memref<1x32xf32, #tpu.memory_space<vmem>>, vector<1x32xf32>
    %12 = vector.broadcast %11 : vector<1x32xf32> to vector<8x32xf32>
    %13 = arith.addf %10, %12 : vector<8x32xf32>
    %cst_10 = arith.constant 5.000000e-01 : f32
    %14 = vector.broadcast %cst_10 : f32 to vector<8x32xf32>
    %15 = arith.mulf %14, %13 : vector<8x32xf32>
    %cst_11 = arith.constant 0.707106769 : f32
    %16 = vector.broadcast %cst_11 : f32 to vector<8x32xf32>
    %17 = arith.mulf %13, %16 : vector<8x32xf32>
    %18 = math.erf %17 : vector<8x32xf32>
    %cst_12 = arith.constant 1.000000e+00 : f32
    %19 = vector.broadcast %cst_12 : f32 to vector<8x32xf32>
    %20 = arith.addf %19, %18 : vector<8x32xf32>
    %21 = arith.mulf %15, %20 : vector<8x32xf32>
    %22 = arith.truncf %21 : vector<8x32xf32> to vector<8x32xbf16>
    %c0_13 = arith.constant 0 : index
    %c0_14 = arith.constant 0 : index
    %23 = vector.load %arg6[%c0_13, %c0_14] : memref<32x16xf32, #tpu.memory_space<vmem>>, vector<32x16xf32>
    %24 = arith.truncf %23 : vector<32x16xf32> to vector<32x16xbf16>
    %cst_15 = arith.constant dense<0.000000e+00> : vector<8x16xf32>
    %25 = tpu.matmul %22, %24, %cst_15 {dimension_numbers = #tpu.dot_dimension_numbers<[1], [0], [0], [1], [0, 0, 1, 1], [], []>} : vector<8x32xbf16>, vector<32x16xbf16>, vector<8x16xf32> -> vector<8x16xf32>
    %c0_16 = arith.constant 0 : index
    %c0_17 = arith.constant 0 : index
    %26 = vector.load %arg7[%c0_16, %c0_17] : memref<1x16xf32, #tpu.memory_space<vmem>>, vector<1x16xf32>
    %27 = vector.broadcast %26 : vector<1x16xf32> to vector<8x16xf32>
    %28 = arith.addf %25, %27 : vector<8x16xf32>
    %c0_18 = arith.constant 0 : index
    %c0_19 = arith.constant 0 : index
    %29 = vector.load %arg8[%c0_18, %c0_19] : memref<8x16xf32, #tpu.memory_space<vmem>>, vector<8x16xf32>
    tpu.vector_store %arg8[%c0_18, %c0_19], %28 {strides = array<i32>} : memref<8x16xf32, #tpu.memory_space<vmem>>, vector<8x16xf32>,
    return
  }
  func.func @transform_0(%arg0: i32) -> (i32, i32) {
    %c0_i32 = arith.constant 0 : i32
    %c0_i32_0 = arith.constant 0 : i32
    return %arg0, %c0_i32 : i32, i32
  }
  func.func @transform_1(%arg0: i32) -> (i32, i32) {
    %c0_i32 = arith.constant 0 : i32
    %c0_i32_0 = arith.constant 0 : i32
    return %arg0, %c0_i32 : i32, i32
  }
  func.func @transform_2(%arg0: i32) -> (i32, i32) {
    %c0_i32 = arith.constant 0 : i32
    %c0_i32_0 = arith.constant 0 : i32
    %c0_i32_1 = arith.constant 0 : i32
    return %c0_i32, %c0_i32_0 : i32, i32
  }
  func.func @transform_3(%arg0: i32) -> (i32, i32) {
    %c0_i32 = arith.constant 0 : i32
    %c0_i32_0 = arith.constant 0 : i32
    %c0_i32_1 = arith.constant 0 : i32
    return %c0_i32, %c0_i32_0 : i32, i32
  }
  func.func @transform_4(%arg0: i32) -> (i32, i32) {
    %c0_i32 = arith.constant 0 : i32
    %c0_i32_0 = arith.constant 0 : i32
    %c0_i32_1 = arith.constant 0 : i32
    return %c0_i32, %c0_i32_0 : i32, i32
  }
  func.func @transform_5(%arg0: i32) -> (i32, i32) {
    %c0_i32 = arith.constant 0 : i32
    %c0_i32_0 = arith.constant 0 : i32
    %c0_i32_1 = arith.constant 0 : i32
    return %c0_i32, %c0_i32_0 : i32, i32
  }
  func.func @transform_6(%arg0: i32) -> (i32, i32) {
    %c0_i32 = arith.constant 0 : i32
    %c0_i32_0 = arith.constant 0 : i32
    %c0_i32_1 = arith.constant 0 : i32
    return %c0_i32, %c0_i32_0 : i32, i32
  }
  func.func @transform_7(%arg0: i32) -> (i32, i32) {
    %c0_i32 = arith.constant 0 : i32
    %c0_i32_0 = arith.constant 0 : i32
    return %arg0, %c0_i32 : i32, i32
  }
}

</mosaic_0001>

<llo_original>
// kernel: tpu_custom_call.1
$region0: #{tpu_custom_call.1}
  #allocation0 [shape = 'u32[]', space=smem, size = 0x4, offset = 0x4, fixed_abs, tag = 'smem constant byte address 0x4 - core index']
  #allocation1 [shape = 'u32[144,128]{1,0:T(1,128)}', space=vmem, size = 0x12000, scoped, tag = 'internal scratch']
  %s0 = inlined_call_operand.vmem [shape: f32[8,32], index: 0, kind: input, shape index: {}]
  %s1 = inlined_call_operand.vmem [shape: f32[8,32], index: 1, kind: input, shape index: {}]
  %s2 = inlined_call_operand.vmem [shape: f32[32,32], index: 2, kind: input, shape index: {}]
  %s3 = inlined_call_operand.hbm [shape: f32[32,32], index: 3, kind: input, shape index: {}]
  %s4 = inlined_call_operand.vmem [shape: f32[1,32], index: 4, kind: input, shape index: {}]
  %s5 = inlined_call_operand.vmem [shape: f32[32,16], index: 5, kind: input, shape index: {}]
  %s6 = inlined_call_operand.vmem [shape: f32[1,16], index: 6, kind: input, shape index: {}]
  %s7 = inlined_call_operand.hbm [shape: f32[8,16], index: 7, kind: output, shape index: {}]
  %s8 = sld [smem:[#allocation0]]
  $region42: #{tpu_custom_call.1} parent=0
    _
  %s10 = ssub.s32 1, %s8
  %s11 = scalar_select 0, %s10, %s8
  $region1: #{tpu_custom_call.1} parent=0
    #allocation2 [shape = 'u8[16384]{0}', space=vmem, size = 0x4000, scoped, tag = 'input window, operand 3, single buffered']
    #allocation3 [shape = 's32[1]{0}', space=sflag, size = 0x4, scoped, tag = 'scoped memory for tpu_custom_call.1']
    #allocation4 [shape = 's32[1]{0}', space=sflag, size = 0x4, scoped, tag = 'scoped memory for tpu_custom_call.1']
    #allocation5 [shape = 'u8[4096]{0}', space=vmem, size = 0x1000, scoped, tag = 'output window, operand 0, single buffered']
    %12 = vsyncpa [#allocation3], 0
    %13 = vsyncpa [#allocation4], 0
    // Predicated region
    $region2: #{tpu_custom_call.1} parent=1 // pred_check
      _
    $region3: #{tpu_custom_call.1} parent=1 // pred_check_branch
      %15 = sbr.rel (0) target = $region5
    $region4: #{tpu_custom_call.1} parent=1 // pred_region
      _
    $region5: #{tpu_custom_call.1} parent=1 // pred_fallthru
      _
    // Predicated region
    $region6: #{tpu_custom_call.1} parent=1 // pred_check
      _
    $region7: #{tpu_custom_call.1} parent=1 // pred_check_branch
      %17 = sbr.rel (0) target = $region9
    $region8: #{tpu_custom_call.1} parent=1 // pred_region
      _
    $region9: #{tpu_custom_call.1} parent=1 // pred_fallthru
      _
    // Predicated region
    $region10: #{tpu_custom_call.1} parent=1 // pred_check
      _
    $region11: #{tpu_custom_call.1} parent=1 // pred_check_branch
      %19 = sbr.rel (0) target = $region13
    $region12: #{tpu_custom_call.1} parent=1 // pred_region
      _
    $region13: #{tpu_custom_call.1} parent=1 // pred_fallthru
      _
    // Predicated region
    $region14: #{tpu_custom_call.1} parent=1 // pred_check
      _
    $region15: #{tpu_custom_call.1} parent=1 // pred_check_branch
      %21 = sbr.rel (0) target = $region17
    $region16: #{tpu_custom_call.1} parent=1 // pred_region
      %s23 = ssub.s32 512, 512
      %24 = vsyncadd [#allocation3], %s23
      %s25 = sshll.u32 [#allocation2], 4
      %s26 = int_to_ptr.vmem [resolvable:$true] %s25
      %31 = dma.hbm_to_vmem [thread:$0]  %s3, 512, %s26, [#allocation3], 128, 128, 8
    $region17: #{tpu_custom_call.1} parent=1 // pred_fallthru
      _
    // Predicated region
    $region18: #{tpu_custom_call.1} parent=1 // pred_check
      _
    $region19: #{tpu_custom_call.1} parent=1 // pred_check_branch
      %33 = sbr.rel (0) target = $region21
    $region20: #{tpu_custom_call.1} parent=1 // pred_region
      _
    $region21: #{tpu_custom_call.1} parent=1 // pred_fallthru
      _
    // Predicated region
    $region22: #{tpu_custom_call.1} parent=1 // pred_check
      _
    $region23: #{tpu_custom_call.1} parent=1 // pred_check_branch
      %35 = sbr.rel (0) target = $region25
    $region24: #{tpu_custom_call.1} parent=1 // pred_region
      _
    $region25: #{tpu_custom_call.1} parent=1 // pred_fallthru
      _
    // Predicated region
    $region26: #{tpu_custom_call.1} parent=1 // pred_check
      _
    $region27: #{tpu_custom_call.1} parent=1 // pred_check_branch
      %37 = sbr.rel (0) target = $region29
    $region28: #{tpu_custom_call.1} parent=1 // pred_region
      _
    $region29: #{tpu_custom_call.1} parent=1 // pred_fallthru
      _
    // Predicated region
    $region30: #{tpu_custom_call.1} parent=1 // pred_check
      _
    $region31: #{tpu_custom_call.1} parent=1 // pred_check_branch
      %39 = sbr.rel (0) target = $region33
    $region32: #{tpu_custom_call.1} parent=1 // pred_region
      %40 = dma.done [#allocation3], 512
    $region33: #{tpu_custom_call.1} parent=1 // pred_fallthru
      _
    %v42 = vld [vmem:[%s0] sm:$0xff]
    %v43 = vpack.c.bf16 %v42, %v42
    %v44 = vld [vmem:[%s1] sm:$0xff]
    %v45 = vpack.c.bf16 %v44, %v44
    %v46 = vld [vmem:[%s2] sm:$0xff]
    %v47 = vld [vmem:[%s2 + $0x8] sm:$0xff]
    %v48 = vld [vmem:[%s2 + $0x10] sm:$0xff]
    %v49 = vld [vmem:[%s2 + $0x18] sm:$0xff]
    %v50 = vpack.c.bf16 %v47, %v46
    %v51 = vpack.c.bf16 %v49, %v48
    %v52 = vld [vmem:[#allocation2] sm:$0xff]
    %v53 = vld [vmem:[#allocation2 + $0x8] sm:$0xff]
    %v54 = vld [vmem:[#allocation2 + $0x10] sm:$0xff]
    %v55 = vld [vmem:[#allocation2 + $0x18] sm:$0xff]
    %v56 = vpack.c.bf16 %v53, %v52
    %v57 = vpack.c.bf16 %v55, %v54
    %vm58 = vcmask 261120
    %v60 = vsel %vm58, %v45, 0
    %62 = vmatprep.subr.bf16.mxu0 0
    %63 = vmatpush1.bf16.msra.mxu0 %v56
    %64 = vmatprep.subr.bf16.mxu0 0
    %65 = vmatpush1.bf16.msra.mxu0 %v57
    %66 = vmatprep.subr.bf16.mxu0 0
    %67 = vmatpush1.bf16.msra.mxu0 0
    %68 = vmatprep.subr.bf16.mxu0 0
    %69 = vmatpush1.bf16.msra.mxu0 0
    %70 = vmatprep.subr.bf16.mxu0 0
    %71 = vmatpush1.bf16.msra.mxu0 0
    %72 = vmatprep.subr.bf16.mxu0 0
    %73 = vmatpush1.bf16.msra.mxu0 0
    %74 = vmatprep.subr.bf16.mxu0 0
    %75 = vmatpush1.bf16.msra.mxu0 0
    %76 = vmatprep.subr.bf16.mxu0 0
    %77 = vmatpush1.bf16.msra.mxu0 0
    %78 = vmatprep.subr.bf16.mxu0 0
    %79 = vmatpush1.bf16.msra.mxu0 0
    %80 = vmatprep.subr.bf16.mxu0 0
    %81 = vmatpush1.bf16.msra.mxu0 0
    %82 = vmatprep.subr.bf16.mxu0 0
    %83 = vmatpush1.bf16.msra.mxu0 0
    %84 = vmatprep.subr.bf16.mxu0 0
    %85 = vmatpush1.bf16.msra.mxu0 0
    %86 = vmatprep.subr.bf16.mxu0 0
    %87 = vmatpush1.bf16.msra.mxu0 0
    %88 = vmatprep.subr.bf16.mxu0 0
    %89 = vmatpush1.bf16.msra.mxu0 0
    %90 = vmatprep.subr.bf16.mxu0 0
    %91 = vmatpush1.bf16.msra.mxu0 0
    %92 = vmatprep.subr.bf16.mxu0 0
    %93 = vmatpush1.bf16.msra.mxu0 0
    %94 = vmatprep.mubr.bf16.mxu0 0
    %95 = vmatmul.mubr.bf16.gmra.mrb[0].mxu0 %v60
    %v96 = vpop.f32.mrb[0].mxu0
    %v97 = vadd.f32 0.0, %v96
    %v98 = vpop.f32.mrb[0].mxu0
    %v99 = vpop.f32.mrb[0].mxu0
    %v100 = vpop.f32.mrb[0].mxu0
    %101 = vdwg.mxu0
    %v103 = vsel %vm58, %v43, 0
    %105 = vmatprep.subr.bf16.mxu0 0
    %106 = vmatpush1.bf16.msra.mxu0 %v50
    %107 = vmatprep.subr.bf16.mxu0 0
    %108 = vmatpush1.bf16.msra.mxu0 %v51
    %109 = vmatprep.subr.bf16.mxu0 0
    %110 = vmatpush1.bf16.msra.mxu0 0
    %111 = vmatprep.subr.bf16.mxu0 0
    %112 = vmatpush1.bf16.msra.mxu0 0
    %113 = vmatprep.subr.bf16.mxu0 0
    %114 = vmatpush1.bf16.msra.mxu0 0
    %115 = vmatprep.subr.bf16.mxu0 0
    %116 = vmatpush1.bf16.msra.mxu0 0
    %117 = vmatprep.subr.bf16.mxu0 0
    %118 = vmatpush1.bf16.msra.mxu0 0
    %119 = vmatprep.subr.bf16.mxu0 0
    %120 = vmatpush1.bf16.msra.mxu0 0
    %121 = vmatprep.subr.bf16.mxu0 0
    %122 = vmatpush1.bf16.msra.mxu0 0
    %123 = vmatprep.subr.bf16.mxu0 0
    %124 = vmatpush1.bf16.msra.mxu0 0
    %125 = vmatprep.subr.bf16.mxu0 0
    %126 = vmatpush1.bf16.msra.mxu0 0
    %127 = vmatprep.subr.bf16.mxu0 0
    %128 = vmatpush1.bf16.msra.mxu0 0
    %129 = vmatprep.subr.bf16.mxu0 0
    %130 = vmatpush1.bf16.msra.mxu0 0
    %131 = vmatprep.subr.bf16.mxu0 0
    %132 = vmatpush1.bf16.msra.mxu0 0
    %133 = vmatprep.subr.bf16.mxu0 0
    %134 = vmatpush1.bf16.msra.mxu0 0
    %135 = vmatprep.subr.bf16.mxu0 0
    %136 = vmatpush1.bf16.msra.mxu0 0
    %137 = vmatprep.mubr.bf16.mxu0 0
    %138 = vmatmul.mubr.bf16.gmra.mrb[0].mxu0 %v103
    %v139 = vpop.f32.mrb[0].mxu0
    %v140 = vadd.f32 %v97, %v139
    %v141 = vpop.f32.mrb[0].mxu0
    %v142 = vpop.f32.mrb[0].mxu0
    %v143 = vpop.f32.mrb[0].mxu0
    %144 = vdwg.mxu0
    %v145 = vld [vmem:[%s4] sm:$0x1]
    %v147 = vlaneseq
    %v148 = vshrl.u32 %v147, 7
    %v149 = vsub.s32 0, %v148
    %v150 = vrot.slane %v145, %v149
    %v152 = vadd.f32 %v140, %v150
    %v153 = vmul.f32 %v152, 0.5
    %v154 = vmul.f32 %v152, 0.70710677
    %v155 = verf.f32.pop %v154
    %v156 = vadd.f32 %v155, 1.0
    %v157 = vmul.f32 %v153, %v156
    %v158 = vpack.c.bf16 %v157, %v157
    %v159 = vld [vmem:[%s5] sm:$0xff]
    %v160 = vld [vmem:[%s5 + $0x8] sm:$0xff]
    %v161 = vld [vmem:[%s5 + $0x10] sm:$0xff]
    %v162 = vld [vmem:[%s5 + $0x18] sm:$0xff]
    %v163 = vpack.c.bf16 %v160, %v159
    %v164 = vpack.c.bf16 %v162, %v161
    %v165 = vld [vmem:[%s6] sm:$0x1]
    %v167 = vlaneseq
    %v168 = vshrl.u32 %v167, 7
    %v169 = vsub.s32 0, %v168
    %v170 = vrot.slane %v165, %v169
    %v173 = vsel %vm58, %v158, 0
    %175 = vmatprep.subr.bf16.mxu0 0
    %176 = vmatpush1.bf16.msra.mxu0 %v163
    %177 = vmatprep.subr.bf16.mxu0 0
    %178 = vmatpush1.bf16.msra.mxu0 %v164
    %179 = vmatprep.subr.bf16.mxu0 0
    %180 = vmatpush1.bf16.msra.mxu0 0
    %181 = vmatprep.subr.bf16.mxu0 0
    %182 = vmatpush1.bf16.msra.mxu0 0
    %183 = vmatprep.subr.bf16.mxu0 0
    %184 = vmatpush1.bf16.msra.mxu0 0
    %185 = vmatprep.subr.bf16.mxu0 0
    %186 = vmatpush1.bf16.msra.mxu0 0
    %187 = vmatprep.subr.bf16.mxu0 0
    %188 = vmatpush1.bf16.msra.mxu0 0
    %189 = vmatprep.subr.bf16.mxu0 0
    %190 = vmatpush1.bf16.msra.mxu0 0
    %191 = vmatprep.subr.bf16.mxu0 0
    %192 = vmatpush1.bf16.msra.mxu0 0
    %193 = vmatprep.subr.bf16.mxu0 0
    %194 = vmatpush1.bf16.msra.mxu0 0
    %195 = vmatprep.subr.bf16.mxu0 0
    %196 = vmatpush1.bf16.msra.mxu0 0
    %197 = vmatprep.subr.bf16.mxu0 0
    %198 = vmatpush1.bf16.msra.mxu0 0
    %199 = vmatprep.subr.bf16.mxu0 0
    %200 = vmatpush1.bf16.msra.mxu0 0
    %201 = vmatprep.subr.bf16.mxu0 0
    %202 = vmatpush1.bf16.msra.mxu0 0
    %203 = vmatprep.subr.bf16.mxu0 0
    %204 = vmatpush1.bf16.msra.mxu0 0
    %205 = vmatprep.subr.bf16.mxu0 0
    %206 = vmatpush1.bf16.msra.mxu0 0
    %207 = vmatprep.mubr.bf16.mxu0 0
    %208 = vmatmul.mubr.bf16.gmra.mrb[0].mxu0 %v173
    %v209 = vpop.f32.mrb[0].mxu0
    %v210 = vadd.f32 %v170, %v209
    %v211 = vpop.f32.mrb[0].mxu0
    %v212 = vpop.f32.mrb[0].mxu0
    %v213 = vpop.f32.mrb[0].mxu0
    %214 = vdwg.mxu0
    %vm215 = vcmask 130048
    %216 = vst.msk [vmem:[#allocation5] sm:$0xff] %vm215, %v210
    // Predicated region
    $region34: #{tpu_custom_call.1} parent=1 // pred_check
      _
    $region35: #{tpu_custom_call.1} parent=1 // pred_check_branch
      %218 = sbr.rel (0) target = $region37
    $region36: #{tpu_custom_call.1} parent=1 // pred_region
      %s220 = ssub.s32 128, 128
      %221 = vsyncadd [#allocation4], %s220
      %s223 = sshll.u32 [#allocation5], 4
      %s224 = int_to_ptr.vmem [resolvable:$true] %s223
      %226 = dma.vmem_to_hbm [thread:$0]  %s224, 128, %s7, [#allocation4]
    $region37: #{tpu_custom_call.1} parent=1 // pred_fallthru
      _
    // Predicated region
    $region38: #{tpu_custom_call.1} parent=1 // pred_check
      _
    $region39: #{tpu_custom_call.1} parent=1 // pred_check_branch
      %228 = sbr.rel (0) target = $region41
    $region40: #{tpu_custom_call.1} parent=1 // pred_region
      %229 = dma.done [#allocation4], 128
    $region41: #{tpu_custom_call.1} parent=1 // pred_fallthru
      _
    %230 = vsyncpa [#allocation3], 1
    %231 = vsyncpa [#allocation4], 1

</llo_original>
